<compile_context>
chip_gen: v7x
topology: tpu7x:2x2x1
jax: 0.10.0
libtpu: 0.0.40
codegen_flags: <defaults>
</compile_context>

<pallas_src>
import jax
import jax.numpy as jnp
from jax.experimental import pallas as pl
from jax.experimental.pallas import tpu as pltpu

LANES = 128


def _round_up(x, m):
    return ((x + m - 1) // m) * m


def _masked_mse_kernel(pred_ref, target_ref, out_ref, acc_sum, acc_cnt):
    j = pl.program_id(1)  # reduction axis (innermost)

    @pl.when(j == 0)
    def _():
        acc_sum[...] = jnp.zeros_like(acc_sum)
        acc_cnt[...] = jnp.zeros_like(acc_cnt)

    t = target_ref[...].astype(jnp.float32)
    p = pred_ref[...].astype(jnp.float32)
    mask = (t > 0.0).astype(jnp.float32)
    diff = (t - p) * mask
    sq = diff * diff

    # Fold the (tile_rows, 128) tile into (8, 128) vreg-shaped partials:
    # pure VPU adds every step; the cross-lane reduction happens once, outside.
    acc_sum[...] += jnp.sum(sq.reshape(-1, 8, LANES), axis=0)
    acc_cnt[...] += jnp.sum(mask.reshape(-1, 8, LANES), axis=0)

    @pl.when(j == pl.num_programs(1) - 1)
    def _():
        out_ref[0, 0] = acc_sum[...]
        out_ref[0, 1] = acc_cnt[...]


def masked_mse_loss(pred, target, *, tile_rows=1024, num_core_splits=2):
    assert pred.ndim == target.ndim, "inconsistent dimensions"
    assert pred.shape == target.shape

    total = 1
    for d in pred.shape:
        total *= d

    rows = pl.cdiv(total, LANES)

    # Tile rows: large to amortize per-step overhead, aligned to 16 sublanes
    # (legal for both f32 and packed bf16 tiles), capped at the actual rows.
    tr = min(tile_rows, _round_up(rows, 16))
    tr = _round_up(tr, 16)

    num_tiles = pl.cdiv(rows, tr)
    splits = num_core_splits if num_tiles >= num_core_splits else 1
    num_tiles = _round_up(num_tiles, splits)
    steps_per_core = num_tiles // splits
    rows_padded = num_tiles * tr
    padded_total = rows_padded * LANES

    def to_slab(x):
        # Keep native dtype (kernel upcasts); pad only when actually needed.
        flat = jnp.ravel(x)
        if padded_total != total:
            # padded target == 0 is excluded by the (> 0) mask
            flat = jnp.pad(flat, (0, padded_total - total))
        return flat.reshape(rows_padded, LANES)

    pred2d = to_slab(pred)
    target2d = to_slab(target)

    row_block = lambda c, j: (c * steps_per_core + j, 0)

    partials = pl.pallas_call(
        _masked_mse_kernel,
        out_shape=jax.ShapeDtypeStruct((splits, 2, 8, LANES), jnp.float32),
        grid_spec=pltpu.PrefetchScalarGridSpec(
            num_scalar_prefetch=0,
            grid=(splits, steps_per_core),
            in_specs=[
                pl.BlockSpec((tr, LANES), row_block),
                pl.BlockSpec((tr, LANES), row_block),
            ],
            out_specs=pl.BlockSpec((1, 2, 8, LANES), lambda c, j: (c, 0, 0, 0)),
            scratch_shapes=[
                pltpu.VMEM((8, LANES), jnp.float32),
                pltpu.VMEM((8, LANES), jnp.float32),
            ],
        ),
        compiler_params=pltpu.CompilerParams(
            dimension_semantics=("parallel", "arbitrary"),
        ),
    )(pred2d, target2d)

    # Tiny final reduction of the per-core, lane-dense partials.
    sum_sq = jnp.sum(partials[:, 0])
    count = jnp.sum(partials[:, 1])
    # mean over valid elements (matches torch: NaN if no valid elements)
    return (sum_sq / count).astype(jnp.float32)


if __name__ == "__main__":
    key = jax.random.PRNGKey(0)
    k1, k2 = jax.random.split(key)

    # Small NCHW example: batch=2, channels=4, spatial=16x16.
    pred = jax.random.normal(k1, (2, 4, 16, 16), dtype=jnp.float32)
    # target: mix of positives and non-positives so the mask is non-trivial.
    target = jax.random.normal(k2, (2, 4, 16, 16), dtype=jnp.float32)

    loss = jax.block_until_ready(masked_mse_loss(pred, target))

    # Reference check in plain JAX.
    mask = target > 0
    ref = jnp.sum(jnp.where(mask, (target - pred) ** 2, 0.0)) / jnp.sum(
        mask.astype(jnp.float32)
    )
    assert jnp.allclose(loss, ref, rtol=1e-5, atol=1e-6), (loss, ref)

    print("KERNEL_OK")
</pallas_src>

<mosaic_0001>
module attributes {stable_mosaic.version = 11 : i64} {
  func.func @_masked_mse_kernel(%arg0: i32, %arg1: i32, %arg2: memref<16x128xf32, #tpu.memory_space<vmem>>, %arg3: memref<16x128xf32, #tpu.memory_space<vmem>>, %arg4: memref<1x2x8x128xf32, #tpu.memory_space<vmem>>, %arg5: memref<8x128xf32, #tpu.memory_space<vmem>>, %arg6: memref<8x128xf32, #tpu.memory_space<vmem>>) attributes {dimension_semantics = [#tpu.dimension_semantics<parallel>, #tpu.dimension_semantics<arbitrary>], iteration_bounds = array<i64: 1, 1>, scalar_prefetch = 0 : i64, scratch_operands = 2 : i64, tpu.core_type = #tpu.core_type<tc>, window_params = [{transform_indices = @transform_0, window_bounds = array<i64: 16, 128>}, {transform_indices = @transform_1, window_bounds = array<i64: 16, 128>}, {transform_indices = @transform_2, window_bounds = array<i64: 1, 2, 8, 128>}]} {
    %c0_i32 = arith.constant 0 : i32
    %0 = arith.cmpi eq, %arg1, %c0_i32 : i32
    %1 = arith.extui %0 : i1 to i32
    %c0_i32_0 = arith.constant 0 : i32
    %2 = arith.cmpi ne, %1, %c0_i32_0 : i32
    scf.if %2 {
      %cst_16 = arith.constant 0.000000e+00 : f32
      %25 = vector.broadcast %cst_16 : f32 to vector<8x128xf32>
      %c0_17 = arith.constant 0 : index
      %c0_18 = arith.constant 0 : index
      %26 = vector.load %arg5[%c0_17, %c0_18] : memref<8x128xf32, #tpu.memory_space<vmem>>, vector<8x128xf32>
      tpu.vector_store %arg5[%c0_17, %c0_18], %25 {strides = array<i32>} : memref<8x128xf32, #tpu.memory_space<vmem>>, vector<8x128xf32>,
      %cst_19 = arith.constant 0.000000e+00 : f32
      %27 = vector.broadcast %cst_19 : f32 to vector<8x128xf32>
      %c0_20 = arith.constant 0 : index
      %c0_21 = arith.constant 0 : index
      %28 = vector.load %arg6[%c0_20, %c0_21] : memref<8x128xf32, #tpu.memory_space<vmem>>, vector<8x128xf32>
      tpu.vector_store %arg6[%c0_20, %c0_21], %27 {strides = array<i32>} : memref<8x128xf32, #tpu.memory_space<vmem>>, vector<8x128xf32>,
    } else {
    }
    %c0 = arith.constant 0 : index
    %c0_1 = arith.constant 0 : index
    %3 = vector.load %arg3[%c0, %c0_1] : memref<16x128xf32, #tpu.memory_space<vmem>>, vector<16x128xf32>
    %c0_2 = arith.constant 0 : index
    %c0_3 = arith.constant 0 : index
    %4 = vector.load %arg2[%c0_2, %c0_3] : memref<16x128xf32, #tpu.memory_space<vmem>>, vector<16x128xf32>
    %cst = arith.constant 0.000000e+00 : f32
    %5 = vector.broadcast %cst : f32 to vector<16x128xf32>
    %6 = arith.cmpf ogt, %3, %5 : vector<16x128xf32>
    %7 = arith.extui %6 : vector<16x128xi1> to vector<16x128xi32>
    %8 = arith.sitofp %7 : vector<16x128xi32> to vector<16x128xf32>
    %9 = arith.subf %3, %4 : vector<16x128xf32>
    %10 = arith.mulf %9, %8 : vector<16x128xf32>
    %11 = arith.mulf %10, %10 : vector<16x128xf32>
    %c0_4 = arith.constant 0 : index
    %c0_5 = arith.constant 0 : index
    %12 = vector.load %arg5[%c0_4, %c0_5] : memref<8x128xf32, #tpu.memory_space<vmem>>, vector<8x128xf32>
    %13 = vector.shape_cast %11 : vector<16x128xf32> to vector<2x8x128xf32>
    %cst_6 = arith.constant dense<0.000000e+00> : vector<8x128xf32>
    %14 = vector.multi_reduction <add>, %13, %cst_6 [0] : vector<2x8x128xf32> to vector<8x128xf32>
    %15 = arith.addf %12, %14 : vector<8x128xf32>
    %c0_7 = arith.constant 0 : index
    %c0_8 = arith.constant 0 : index
    %16 = vector.load %arg5[%c0_7, %c0_8] : memref<8x128xf32, #tpu.memory_space<vmem>>, vector<8x128xf32>
    tpu.vector_store %arg5[%c0_7, %c0_8], %15 {strides = array<i32>} : memref<8x128xf32, #tpu.memory_space<vmem>>, vector<8x128xf32>,
    %c0_9 = arith.constant 0 : index
    %c0_10 = arith.constant 0 : index
    %17 = vector.load %arg6[%c0_9, %c0_10] : memref<8x128xf32, #tpu.memory_space<vmem>>, vector<8x128xf32>
    %18 = vector.shape_cast %8 : vector<16x128xf32> to vector<2x8x128xf32>
    %cst_11 = arith.constant dense<0.000000e+00> : vector<8x128xf32>
    %19 = vector.multi_reduction <add>, %18, %cst_11 [0] : vector<2x8x128xf32> to vector<8x128xf32>
    %20 = arith.addf %17, %19 : vector<8x128xf32>
    %c0_12 = arith.constant 0 : index
    %c0_13 = arith.constant 0 : index
    %21 = vector.load %arg6[%c0_12, %c0_13] : memref<8x128xf32, #tpu.memory_space<vmem>>, vector<8x128xf32>
    tpu.vector_store %arg6[%c0_12, %c0_13], %20 {strides = array<i32>} : memref<8x128xf32, #tpu.memory_space<vmem>>, vector<8x128xf32>,
    %c0_i32_14 = arith.constant 0 : i32
    %22 = arith.cmpi eq, %arg1, %c0_i32_14 : i32
    %23 = arith.extui %22 : i1 to i32
    %c0_i32_15 = arith.constant 0 : i32
    %24 = arith.cmpi ne, %23, %c0_i32_15 : i32
    scf.if %24 {
      %c0_16 = arith.constant 0 : index
      %c0_17 = arith.constant 0 : index
      %25 = vector.load %arg5[%c0_16, %c0_17] : memref<8x128xf32, #tpu.memory_space<vmem>>, vector<8x128xf32>
      %c0_18 = arith.constant 0 : index
      %c0_19 = arith.constant 0 : index
      %c0_20 = arith.constant 0 : index
      %c0_21 = arith.constant 0 : index
      %26 = vector.load %arg4[%c0_18, %c0_19, %c0_20, %c0_21] : memref<1x2x8x128xf32, #tpu.memory_space<vmem>>, vector<1x1x8x128xf32>
      %27 = vector.shape_cast %26 : vector<1x1x8x128xf32> to vector<8x128xf32>
      %28 = vector.shape_cast %25 : vector<8x128xf32> to vector<1x1x8x128xf32>
      tpu.vector_store %arg4[%c0_18, %c0_19, %c0_20, %c0_21], %28 {strides = array<i32>} : memref<1x2x8x128xf32, #tpu.memory_space<vmem>>, vector<1x1x8x128xf32>,
      %c0_22 = arith.constant 0 : index
      %c0_23 = arith.constant 0 : index
      %29 = vector.load %arg6[%c0_22, %c0_23] : memref<8x128xf32, #tpu.memory_space<vmem>>, vector<8x128xf32>
      %c0_24 = arith.constant 0 : index
      %c1 = arith.constant 1 : index
      %c0_25 = arith.constant 0 : index
      %c0_26 = arith.constant 0 : index
      %30 = vector.load %arg4[%c0_24, %c1, %c0_25, %c0_26] : memref<1x2x8x128xf32, #tpu.memory_space<vmem>>, vector<1x1x8x128xf32>
      %31 = vector.shape_cast %30 : vector<1x1x8x128xf32> to vector<8x128xf32>
      %32 = vector.shape_cast %29 : vector<8x128xf32> to vector<1x1x8x128xf32>
      tpu.vector_store %arg4[%c0_24, %c1, %c0_25, %c0_26], %32 {strides = array<i32>} : memref<1x2x8x128xf32, #tpu.memory_space<vmem>>, vector<1x1x8x128xf32>,
    } else {
    }
    return
  }
  func.func @transform_0(%arg0: i32, %arg1: i32) -> (i32, i32) {
    %c1_i32 = arith.constant 1 : i32
    %0 = arith.muli %arg0, %c1_i32 : i32
    %1 = arith.addi %0, %arg1 : i32
    %c0_i32 = arith.constant 0 : i32
    %c0_i32_0 = arith.constant 0 : i32
    return %1, %c0_i32 : i32, i32
  }
  func.func @transform_1(%arg0: i32, %arg1: i32) -> (i32, i32) {
    %c1_i32 = arith.constant 1 : i32
    %0 = arith.muli %arg0, %c1_i32 : i32
    %1 = arith.addi %0, %arg1 : i32
    %c0_i32 = arith.constant 0 : i32
    %c0_i32_0 = arith.constant 0 : i32
    return %1, %c0_i32 : i32, i32
  }
  func.func @transform_2(%arg0: i32, %arg1: i32) -> (i32, i32, i32, i32) {
    %c0_i32 = arith.constant 0 : i32
    %c0_i32_0 = arith.constant 0 : i32
    %c0_i32_1 = arith.constant 0 : i32
    %c0_i32_2 = arith.constant 0 : i32
    return %arg0, %c0_i32, %c0_i32_0, %c0_i32_1 : i32, i32, i32, i32
  }
}

</mosaic_0001>

<llo_original>
// kernel: tpu_custom_call.1
$region0: #{tpu_custom_call.1}
  #allocation0 [shape = 'u32[]', space=smem, size = 0x4, offset = 0x4, fixed_abs, tag = 'smem constant byte address 0x4 - core index']
  #allocation1 [shape = 'u32[144,128]{1,0:T(1,128)}', space=vmem, size = 0x12000, scoped, tag = 'internal scratch']
  #allocation2 [shape = 'f32[8,128]{1,0:T(8,128)}', space=vmem, size = 0x1000, scoped, tag = 'scratch operand']
  #allocation3 [shape = 'f32[8,128]{1,0:T(8,128)}', space=vmem, size = 0x1000, scoped, tag = 'scratch operand']
  %s0 = inlined_call_operand.hbm [shape: f32[16,128], index: 0, kind: input, shape index: {}]
  %s1 = inlined_call_operand.hbm [shape: f32[16,128], index: 1, kind: input, shape index: {}]
  %s2 = inlined_call_operand.hbm [shape: f32[1,2,8,128], index: 2, kind: output, shape index: {}]
  %s3 = sld [smem:[#allocation0]]
  $region34: #{tpu_custom_call.1} parent=0
    _
  %s5 = ssub.s32 1, %s3
  %s6 = scalar_select 0, %s5, %s3
  $region1: #{tpu_custom_call.1} parent=0
    #allocation4 [shape = 'u8[8192]{0}', space=vmem, size = 0x2000, scoped, tag = 'input window, operand 0, single buffered']
    #allocation5 [shape = 's32[1]{0}', space=sflag, size = 0x4, scoped, tag = 'scoped memory for tpu_custom_call.1']
    #allocation6 [shape = 's32[1]{0}', space=sflag, size = 0x4, scoped, tag = 'scoped memory for tpu_custom_call.1']
    #allocation7 [shape = 'u8[8192]{0}', space=vmem, size = 0x2000, scoped, tag = 'input window, operand 1, single buffered']
    #allocation8 [shape = 's32[1]{0}', space=sflag, size = 0x4, scoped, tag = 'scoped memory for tpu_custom_call.1']
    #allocation9 [shape = 'u8[8192]{0}', space=vmem, size = 0x2000, scoped, tag = 'output window, operand 0, single buffered']
    %7 = vsyncpa [#allocation5], 0
    %8 = vsyncpa [#allocation8], 0
    %9 = vsyncpa [#allocation6], 0
    // Predicated region
    $region2: #{tpu_custom_call.1} parent=1 // pred_check
      _
    $region3: #{tpu_custom_call.1} parent=1 // pred_check_branch
      %11 = sbr.rel (0) target = $region5
    $region4: #{tpu_custom_call.1} parent=1 // pred_region
      %s12 = sadd.s32 0, 0
      %s13 = smul.u32 2, %s12
      %s15 = ssub.s32 256, 256
      %16 = vsyncadd [#allocation5], %s15
      %s17 = smul.addr %s13, 128
      %s18 = scalar_lea.hbm %s0, %s17
      %s19 = sshll.u32 [#allocation4], 4
      %s20 = int_to_ptr.vmem [resolvable:$true] %s19
      %25 = dma.hbm_to_vmem [thread:$0]  %s18, 256, %s20, [#allocation5], 128, 128, 8
    $region5: #{tpu_custom_call.1} parent=1 // pred_fallthru
      _
    // Predicated region
    $region6: #{tpu_custom_call.1} parent=1 // pred_check
      _
    $region7: #{tpu_custom_call.1} parent=1 // pred_check_branch
      %27 = sbr.rel (0) target = $region9
    $region8: #{tpu_custom_call.1} parent=1 // pred_region
      %s28 = sadd.s32 0, 0
      %s29 = smul.u32 2, %s28
      %s31 = ssub.s32 256, 256
      %32 = vsyncadd [#allocation8], %s31
      %s33 = smul.addr %s29, 128
      %s34 = scalar_lea.hbm %s1, %s33
      %s35 = sshll.u32 [#allocation7], 4
      %s36 = int_to_ptr.vmem [resolvable:$true] %s35
      %41 = dma.hbm_to_vmem [thread:$0]  %s34, 256, %s36, [#allocation8], 128, 128, 8
    $region9: #{tpu_custom_call.1} parent=1 // pred_fallthru
      _
    // Predicated region
    $region10: #{tpu_custom_call.1} parent=1 // pred_check
      _
    $region11: #{tpu_custom_call.1} parent=1 // pred_check_branch
      %43 = sbr.rel (0) target = $region13
    $region12: #{tpu_custom_call.1} parent=1 // pred_region
      %44 = dma.done [#allocation5], 256
    $region13: #{tpu_custom_call.1} parent=1 // pred_fallthru
      _
    // Predicated region
    $region14: #{tpu_custom_call.1} parent=1 // pred_check
      _
    $region15: #{tpu_custom_call.1} parent=1 // pred_check_branch
      %46 = sbr.rel (0) target = $region17
    $region16: #{tpu_custom_call.1} parent=1 // pred_region
      %47 = dma.done [#allocation8], 256
    $region17: #{tpu_custom_call.1} parent=1 // pred_fallthru
      _
    %s48 = sadd.s32 0, 0
    %s49 = smul.u32 2, %s48
    %s50 = sadd.s32 0, 0
    %s51 = smul.u32 2, %s50
    %p52 = scmp.eq.s32.totalorder 0, 0
    // Predicated region
    $region18: #{tpu_custom_call.1} parent=1 // pred_check
      %p53 = pneg %p52
    $region19: #{tpu_custom_call.1} parent=1 // pred_check_branch
      %55 = sbr.rel (%p53) target = $region21
    $region20: #{tpu_custom_call.1} parent=1 // pred_region
      %56 = vst [vmem:[#allocation2] sm:$0xff] 0.0
      %57 = vst [vmem:[#allocation3] sm:$0xff] 0.0
    $region21: #{tpu_custom_call.1} parent=1 // pred_fallthru
      _
    %v58 = vld [vmem:[#allocation7] sm:$0xff]
    %v59 = vld [vmem:[#allocation7 + $0x8] sm:$0xff]
    %v60 = vld [vmem:[#allocation4] sm:$0xff]
    %v61 = vld [vmem:[#allocation4 + $0x8] sm:$0xff]
    %vm62 = vcmp.gt.f32.partialorder %v58, 0.0
    %vm63 = vcmp.gt.f32.partialorder %v59, 0.0
    %v64 = vsel %vm62, 1, 0
    %v65 = vsel %vm63, 1, 0
    %v66 = vcvt.s32.f32 %v64
    %v67 = vcvt.s32.f32 %v65
    %v68 = vsub.f32 %v58, %v60
    %v69 = vsub.f32 %v59, %v61
    %v70 = vmul.f32 %v68, %v66
    %v71 = vmul.f32 %v69, %v67
    %v72 = vmul.f32 %v70, %v70
    %v73 = vmul.f32 %v71, %v71
    %v74 = vld [vmem:[#allocation2] sm:$0xff]
    %v75 = vadd.f32 %v72, %v73
    %v76 = vadd.f32 %v74, %v75
    %77 = vst [vmem:[#allocation2] sm:$0xff] %v76
    %v78 = vld [vmem:[#allocation3] sm:$0xff]
    %v79 = vadd.f32 %v66, %v67
    %v80 = vadd.f32 %v78, %v79
    %81 = vst [vmem:[#allocation3] sm:$0xff] %v80
    // Predicated region
    $region22: #{tpu_custom_call.1} parent=1 // pred_check
      %p82 = pneg %p52
    $region23: #{tpu_custom_call.1} parent=1 // pred_check_branch
      %84 = sbr.rel (%p82) target = $region25
    $region24: #{tpu_custom_call.1} parent=1 // pred_region
      %v85 = vld [vmem:[#allocation2] sm:$0xff]
      %86 = vst [vmem:[#allocation9] sm:$0xff] %v85
      %v87 = vld [vmem:[#allocation3] sm:$0xff]
      %s88 = scalar_lea.vmem [#allocation9], 8
      %89 = vst [vmem:[%s88] sm:$0xff] %v87
    $region25: #{tpu_custom_call.1} parent=1 // pred_fallthru
      _
    // Predicated region
    $region26: #{tpu_custom_call.1} parent=1 // pred_check
      _
    $region27: #{tpu_custom_call.1} parent=1 // pred_check_branch
      %91 = sbr.rel (0) target = $region29
    $region28: #{tpu_custom_call.1} parent=1 // pred_region
      %s93 = ssub.s32 256, 256
      %94 = vsyncadd [#allocation6], %s93
      %s95 = sshll.u32 [#allocation9], 4
      %s96 = int_to_ptr.vmem [resolvable:$true] %s95
      %101 = dma.vmem_to_hbm [thread:$0]  %s96, 256, %s2, [#allocation6], 128, 128, 8
    $region29: #{tpu_custom_call.1} parent=1 // pred_fallthru
      _
    // Predicated region
    $region30: #{tpu_custom_call.1} parent=1 // pred_check
      _
    $region31: #{tpu_custom_call.1} parent=1 // pred_check_branch
      %103 = sbr.rel (0) target = $region33
    $region32: #{tpu_custom_call.1} parent=1 // pred_region
      %104 = dma.done [#allocation6], 256
    $region33: #{tpu_custom_call.1} parent=1 // pred_fallthru
      _
    %105 = vsyncpa [#allocation5], 1
    %106 = vsyncpa [#allocation8], 1
    %107 = vsyncpa [#allocation6], 1

</llo_original>
